<compile_context>
chip_gen: v6e
topology: v6e:2x2x1
jax: 0.10.0
libtpu: 0.0.40
codegen_flags: <defaults>
</compile_context>

<pallas_src>
import functools

import jax
import jax.numpy as jnp
from jax import lax
from jax.experimental import pallas as pl
from jax.experimental.pallas import tpu as pltpu

_MAX_TILE_ELEMS = 1 << 20           # elems per slab per pipeline buffer (4 MiB @ f32)
_VMEM_LIMIT_BYTES = 40 << 20        # explicit scoped-VMEM limit (safe on v5e/v6e/v7x)
_LANE_CHOICES = (4096, 2048, 1024, 512, 256, 128)
_PAD_GRANULE = 8 * 128              # pad awkward flat sizes to a lane-dense multiple


# ----------------------------------------------------------------------------
# In-kernel stateless RNG + mask
# ----------------------------------------------------------------------------
def _dropout_mask(seed_ref, shape, *, threshold, scale, tile_r, log2_cols, pair_shift):
    """float32 mask tile: 0 with prob p, scale=1/(1-p) with prob 1-p.

    Pure function of (seed, global flat element index) -> tiling/layout invariant.
    For the interleaved complex path the flat index is shifted right by 1 so each
    (re, im) pair shares one mask value.
    NOTE: index math is 32-bit; mask pattern repeats for tensors >= 2^32 elements.
    """
    # Scalar-unit work: seed mixing and this tile's global flat offset.
    seed_mix = seed_ref[0].astype(jnp.uint32) * jnp.uint32(0x9E3779B9)
    base = (pl.program_id(0) * tile_r) << log2_cols

    rows_i = lax.broadcasted_iota(jnp.int32, shape, 0)
    cols_i = lax.broadcasted_iota(jnp.int32, shape, 1)
    lin = (rows_i << log2_cols) + cols_i + base        # power-of-two cols -> shift, no vmul
    idx = lin.astype(jnp.uint32)
    if pair_shift:
        idx = idx >> jnp.uint32(1)                     # (re, im) pair shares a mask

    # Trimmed lowbias32 mixer: 2 vector multiplies per element, plenty for dropout.
    x = idx ^ seed_mix
    x = (x ^ (x >> jnp.uint32(16))) * jnp.uint32(0x7FEB352D)
    x = (x ^ (x >> jnp.uint32(15))) * jnp.uint32(0x846CA68B)
    keep = x >= jnp.uint32(threshold)                  # P(keep) = 1 - p
    return jnp.where(keep, jnp.float32(scale), jnp.float32(0.0))


def _dropout_kernel(seed_ref, x_ref, o_ref, *, threshold, scale, tile_r,
                    log2_cols, pair_shift):
    m = _dropout_mask(seed_ref, x_ref.shape, threshold=threshold, scale=scale,
                      tile_r=tile_r, log2_cols=log2_cols, pair_shift=pair_shift)
    o_ref[...] = (x_ref[...].astype(jnp.float32) * m).astype(o_ref.dtype)


# ----------------------------------------------------------------------------
# Layout helpers
# ----------------------------------------------------------------------------
def _choose_layout(total):
    """Flat length -> (rows, cols, padded_total); cols is a power-of-two multiple
    of 128 so every store is an unmasked lane-dense vst."""
    padded_fallback = ((total + _PAD_GRANULE - 1) // _PAD_GRANULE) * _PAD_GRANULE
    for padded in (total, padded_fallback):
        for cols in _LANE_CHOICES:
            if padded > 0 and padded % cols == 0:
                return padded // cols, cols, padded
    raise AssertionError("unreachable: padded size is a multiple of 1024")


def _row_tile(rows, cols, itemsize):
    """Largest sublane tile that is a multiple of the dtype packing granule and
    keeps one slab <= _MAX_TILE_ELEMS (full-vreg loads/stores, big DMA steps)."""
    granule = {4: 8, 2: 16, 1: 32}.get(itemsize, 8)
    if rows <= granule:
        return rows                                    # block == full sublane extent
    t = min(rows, max(granule, _MAX_TILE_ELEMS // max(cols, 1)))
    return max(granule, (t // granule) * granule)


# ----------------------------------------------------------------------------
# pallas_call wrapper
# ----------------------------------------------------------------------------
def _run_dropout(x2d, seed_arr, *, threshold, scale, pair_shift, log2_cols, tile_r):
    rows, cols = x2d.shape
    grid = (pl.cdiv(rows, tile_r),)
    spec = pl.BlockSpec((tile_r, cols), lambda i, seed_ref: (i, 0))
    kernel = functools.partial(_dropout_kernel, threshold=threshold, scale=scale,
                               tile_r=tile_r, log2_cols=log2_cols,
                               pair_shift=pair_shift)
    return pl.pallas_call(
        kernel,
        out_shape=jax.ShapeDtypeStruct((rows, cols), x2d.dtype),
        grid_spec=pltpu.PrefetchScalarGridSpec(
            num_scalar_prefetch=1,
            grid=grid,
            in_specs=[spec],
            out_specs=spec,
        ),
        compiler_params=pltpu.CompilerParams(
            dimension_semantics=("parallel",),
            vmem_limit_bytes=_VMEM_LIMIT_BYTES,
        ),
    )(seed_arr, x2d)


# ----------------------------------------------------------------------------
# Public wrapper (== ComplexDropout.forward)
# ----------------------------------------------------------------------------
@functools.partial(jax.jit, static_argnames=("p", "training"))
def complex_dropout(x, p: float, seed, training: bool = True):
    if (not training) or p == 0.0:
        return x
    if p >= 1.0:
        return jnp.zeros_like(x)

    scale = 1.0 / (1.0 - p)
    threshold = min(int(round(p * 2.0 ** 32)), 2 ** 32 - 1)   # P(drop) = threshold / 2^32

    orig_shape = x.shape
    is_complex = jnp.iscomplexobj(x)

    if is_complex:
        # TODO(synk): a zero-copy complex64->f32 reinterpret (bitcast) is not
        # expressible in lax; pack to a single interleaved (re, im) stream so the
        # kernel has exactly one input and one output DMA stream (cols even, so a
        # pair never straddles a row).
        flat = jnp.stack([jnp.real(x), jnp.imag(x)], axis=-1).reshape(-1)
        pair_shift = 1
    else:
        flat = x.reshape(-1)
        pair_shift = 0

    total = flat.shape[0]
    rows, cols, padded_total = _choose_layout(total)
    if padded_total != total:
        flat = jnp.concatenate(
            [flat, jnp.zeros((padded_total - total,), dtype=flat.dtype)])
    x2d = flat.reshape(rows, cols)

    tile_r = _row_tile(rows, cols, x2d.dtype.itemsize)
    log2_cols = cols.bit_length() - 1
    seed_arr = jnp.asarray(seed, dtype=jnp.int32).reshape((1,))

    out2d = _run_dropout(x2d, seed_arr, threshold=threshold, scale=scale,
                         pair_shift=pair_shift, log2_cols=log2_cols, tile_r=tile_r)

    out_flat = out2d.reshape(-1)
    if padded_total != total:
        out_flat = out_flat[:total]

    if is_complex:
        pairs = out_flat.reshape(orig_shape + (2,))
        return lax.complex(pairs[..., 0], pairs[..., 1]).astype(x.dtype)
    return out_flat.reshape(orig_shape)


# ----------------------------------------------------------------------------
# Self-test
# ----------------------------------------------------------------------------
if __name__ == "__main__":
    key = jax.random.PRNGKey(0)
    kr, ki, kp = jax.random.split(key, 3)
    shape = (2, 4, 16, 16)                      # NCHW
    xr = jax.random.normal(kr, shape, dtype=jnp.float32)
    xi = jax.random.normal(ki, shape, dtype=jnp.float32)
    x = lax.complex(xr, xi)                     # complex64

    p = 0.3
    scale = 1.0 / (1.0 - p)

    # --- training + complex path (the hot path of the module) ---
    out = jax.block_until_ready(complex_dropout(x, p=p, seed=42, training=True))
    assert out.shape == shape and jnp.iscomplexobj(out)
    real_ok = jnp.logical_or(jnp.isclose(out.real, 0.0, atol=1e-6),
                             jnp.isclose(out.real, xr * scale, rtol=1e-5, atol=1e-6))
    imag_ok = jnp.logical_or(jnp.isclose(out.imag, 0.0, atol=1e-6),
                             jnp.isclose(out.imag, xi * scale, rtol=1e-5, atol=1e-6))
    same_mask = (out.real == 0.0) == (out.imag == 0.0)   # identical mask on re & im
    assert bool(jnp.all(real_ok)) and bool(jnp.all(imag_ok)) and bool(jnp.all(same_mask))
    drop_frac = float(jnp.mean((out.real == 0.0).astype(jnp.float32)))
    assert 0.15 < drop_frac < 0.45, f"unexpected drop fraction {drop_frac}"

    # --- eval mode: identity ---
    out_eval = complex_dropout(x, p=p, seed=42, training=False)
    assert bool(jnp.allclose(out_eval, x))

    # --- training + real-valued f32 path ---
    out_real = jax.block_until_ready(complex_dropout(xr, p=p, seed=7, training=True))
    assert out_real.dtype == xr.dtype and out_real.shape == xr.shape
    ok = jnp.logical_or(jnp.isclose(out_real, 0.0, atol=1e-6),
                        jnp.isclose(out_real, xr * scale, rtol=1e-5, atol=1e-6))
    assert bool(jnp.all(ok))

    # --- awkward (non-multiple-of-128) shape exercises the pad/slice path ---
    x_odd = jax.random.normal(kp, (3, 5, 7), dtype=jnp.float32)
    out_odd = jax.block_until_ready(complex_dropout(x_odd, p=0.5, seed=3, training=True))
    assert out_odd.shape == x_odd.shape
    ok = jnp.logical_or(jnp.isclose(out_odd, 0.0, atol=1e-6),
                        jnp.isclose(out_odd, x_odd * 2.0, rtol=1e-5, atol=1e-6))
    assert bool(jnp.all(ok))

    # --- bf16 real path (native dtype preserved end-to-end) ---
    x_bf = jax.random.normal(kp, (2, 64, 128), dtype=jnp.float32).astype(jnp.bfloat16)
    out_bf = jax.block_until_ready(complex_dropout(x_bf, p=p, seed=11, training=True))
    assert out_bf.dtype == jnp.bfloat16 and out_bf.shape == x_bf.shape
    ref_bf = (x_bf.astype(jnp.float32) * scale).astype(jnp.bfloat16).astype(jnp.float32)
    ok = jnp.logical_or(jnp.isclose(out_bf.astype(jnp.float32), 0.0, atol=1e-3),
                        jnp.isclose(out_bf.astype(jnp.float32), ref_bf, rtol=2e-2, atol=1e-3))
    assert bool(jnp.all(ok))

    print("KERNEL_OK")
</pallas_src>

<mosaic_0001>
module attributes {stable_mosaic.version = 11 : i64} {
  func.func @_dropout_kernel(%arg0: i32, %arg1: memref<1xi32, #tpu.memory_space<smem>>, %arg2: memref<1x4096xf32, #tpu.memory_space<vmem>>, %arg3: memref<1x4096xf32, #tpu.memory_space<vmem>>) attributes {dimension_semantics = [#tpu.dimension_semantics<parallel>], iteration_bounds = array<i64: 1>, scalar_prefetch = 1 : i64, scratch_operands = 0 : i64, tpu.core_type = #tpu.core_type<tc>, window_params = [{transform_indices = @transform_0, window_bounds = array<i64: 1, 4096>}, {transform_indices = @transform_1, window_bounds = array<i64: 1, 4096>}]} {
    %c0 = arith.constant 0 : index
    %0 = memref.load %arg1[%c0] : memref<1xi32, #tpu.memory_space<smem>>
    %c-1640531527_i32 = arith.constant -1640531527 : i32
    %1 = arith.muli %0, %c-1640531527_i32 : i32
    %c1_i32 = arith.constant 1 : i32
    %2 = arith.muli %arg0, %c1_i32 : i32
    %c12_i32 = arith.constant 12 : i32
    %3 = arith.shli %2, %c12_i32 : i32
    %4 = tpu.iota {dimensions = array<i32: 0>} : vector<1x4096xi32>
    %5 = tpu.iota {dimensions = array<i32: 1>} : vector<1x4096xi32>
    %c12_i32_0 = arith.constant 12 : i32
    %6 = vector.broadcast %c12_i32_0 : i32 to vector<1x4096xi32>
    %7 = arith.shli %4, %6 : vector<1x4096xi32>
    %8 = arith.addi %7, %5 : vector<1x4096xi32>
    %9 = vector.broadcast %3 : i32 to vector<1x4096xi32>
    %10 = arith.addi %8, %9 : vector<1x4096xi32>
    %c1_i32_1 = arith.constant 1 : i32
    %11 = vector.broadcast %c1_i32_1 : i32 to vector<1x4096xi32>
    %12 = arith.shrui %10, %11 : vector<1x4096xi32>
    %13 = vector.broadcast %1 : i32 to vector<1x4096xi32>
    %14 = arith.xori %12, %13 : vector<1x4096xi32>
    %c16_i32 = arith.constant 16 : i32
    %15 = vector.broadcast %c16_i32 : i32 to vector<1x4096xi32>
    %16 = arith.shrui %14, %15 : vector<1x4096xi32>
    %17 = arith.xori %14, %16 : vector<1x4096xi32>
    %c2146121005_i32 = arith.constant 2146121005 : i32
    %18 = vector.broadcast %c2146121005_i32 : i32 to vector<1x4096xi32>
    %19 = arith.muli %17, %18 : vector<1x4096xi32>
    %c15_i32 = arith.constant 15 : i32
    %20 = vector.broadcast %c15_i32 : i32 to vector<1x4096xi32>
    %21 = arith.shrui %19, %20 : vector<1x4096xi32>
    %22 = arith.xori %19, %21 : vector<1x4096xi32>
    %c-2073254261_i32 = arith.constant -2073254261 : i32
    %23 = vector.broadcast %c-2073254261_i32 : i32 to vector<1x4096xi32>
    %24 = arith.muli %22, %23 : vector<1x4096xi32>
    %c1288490189_i32 = arith.constant 1288490189 : i32
    %25 = vector.broadcast %c1288490189_i32 : i32 to vector<1x4096xi32>
    %26 = arith.cmpi uge, %24, %25 : vector<1x4096xi32>
    %cst = arith.constant 1.42857146 : f32
    %cst_2 = arith.constant 0.000000e+00 : f32
    %27 = vector.broadcast %cst : f32 to vector<1x4096xf32>
    %28 = vector.broadcast %cst_2 : f32 to vector<1x4096xf32>
    %29 = arith.select %26, %27, %28 : vector<1x4096xi1>, vector<1x4096xf32>
    %c0_3 = arith.constant 0 : index
    %c0_4 = arith.constant 0 : index
    %30 = vector.load %arg2[%c0_3, %c0_4] : memref<1x4096xf32, #tpu.memory_space<vmem>>, vector<1x4096xf32>
    %31 = arith.mulf %30, %29 : vector<1x4096xf32>
    %c0_5 = arith.constant 0 : index
    %c0_6 = arith.constant 0 : index
    %32 = vector.load %arg3[%c0_5, %c0_6] : memref<1x4096xf32, #tpu.memory_space<vmem>>, vector<1x4096xf32>
    tpu.vector_store %arg3[%c0_5, %c0_6], %31 {strides = array<i32>} : memref<1x4096xf32, #tpu.memory_space<vmem>>, vector<1x4096xf32>,
    return
  }
  func.func @transform_0(%arg0: i32, %arg1: memref<1xi32, #tpu.memory_space<smem>>) -> (i32, i32) {
    %c0_i32 = arith.constant 0 : i32
    %c0_i32_0 = arith.constant 0 : i32
    return %arg0, %c0_i32 : i32, i32
  }
  func.func @transform_1(%arg0: i32, %arg1: memref<1xi32, #tpu.memory_space<smem>>) -> (i32, i32) {
    %c0_i32 = arith.constant 0 : i32
    %c0_i32_0 = arith.constant 0 : i32
    return %arg0, %c0_i32 : i32, i32
  }
}

</mosaic_0001>

<llo_original>
// kernel: custom-call.1
$region0: #{custom-call.1}
  %s0 = inlined_call_operand.hbm [shape: c64[2,4,16,16], index: 0, kind: input, shape index: {}]
  %s1 = inlined_call_operand.vmem [shape: f32[2,4,16,16], index: 1, kind: output, shape index: {}]
  %s2 = scalar_lea.hbm %s0, 2048
  $region1: #{custom-call.1} parent=0
    #allocation0 [shape = 's32[1]{0}', space=sflag, size = 0x4, scoped, tag = 'scoped memory for custom-call.1']
    %3 = vsyncpa [#allocation0], 0
    %s4 = sshll.u32 %s1, 4
    %s5 = int_to_ptr.vmem [resolvable:$true] %s4
    %7 = dma.hbm_to_vmem [thread:$0]  %s2, 2048, %s5, [#allocation0]
    %8 = dma.done [#allocation0], 2048
    %9 = vsyncpa [#allocation0], 1

// kernel: custom-call
$region0: #{custom-call}
  %s0 = inlined_call_operand.hbm [shape: c64[2,4,16,16], index: 0, kind: input, shape index: {}]
  %s1 = inlined_call_operand.vmem [shape: f32[2,4,16,16], index: 1, kind: output, shape index: {}]
  $region1: #{custom-call} parent=0
    #allocation0 [shape = 's32[1]{0}', space=sflag, size = 0x4, scoped, tag = 'scoped memory for custom-call']
    %2 = vsyncpa [#allocation0], 0
    %s3 = sshll.u32 %s1, 4
    %s4 = int_to_ptr.vmem [resolvable:$true] %s3
    %6 = dma.hbm_to_vmem [thread:$0]  %s0, 2048, %s4, [#allocation0]
    %7 = dma.done [#allocation0], 2048
    %8 = vsyncpa [#allocation0], 1

// kernel: complex_dropout.1
$region0: #{complex_dropout.1}
  #allocation0 [shape = 'u32[]', space=smem, size = 0x4, offset = 0x4, fixed_abs, tag = 'smem constant byte address 0x4 - core index']
  #allocation1 [shape = 'u32[144,128]{1,0:T(1,128)}', space=vmem, size = 0x12000, scoped, tag = 'internal scratch']
  #allocation2 [shape = 's32[1]{0}', space=sflag, size = 0x4, scoped, tag = 'scoped memory for complex_dropout.1']
  #allocation3 [shape = 's32[1]{0:T(128)S(6)}', space=smem, size = 0x200, scoped, tag = 'prefetched SMEM operand 0']
  %s0 = inlined_call_operand.<no memory space> [shape: s32[1], index: 0, kind: input, shape index: {}]
  %s1 = inlined_call_operand.vmem [shape: f32[1,4096], index: 1, kind: input, shape index: {}]
  %s2 = inlined_call_operand.vmem [shape: f32[1,4096], index: 2, kind: output, shape index: {}]
  %s3 = sld [smem:[#allocation0]]
  $region14: #{complex_dropout.1} parent=0
    _
  %s5 = ssub.s32 1, %s3
  %s6 = scalar_select 0, %s5, %s3
  %7 = sst [smem:[#allocation3]] %s0
  // Predicated region
  $region2: #{complex_dropout.1} parent=0 // pred_check
    _
  $region3: #{complex_dropout.1} parent=0 // pred_check_branch
    %9 = sbr.rel (0) target = $region5
  $region4: #{complex_dropout.1} parent=0 // pred_region
    _
  $region5: #{complex_dropout.1} parent=0 // pred_fallthru
    _
  %s10 = sld [smem:[#allocation3]]
  %s11 = smul.u32 %s10, 2654435769
  %s12 = sshll.u32 0, 12
  %v13 = vlaneseq
  %v14 = vshrl.u32 %v13, 7
  %v15 = vlaneseq
  %v16 = vand.u32 %v15, 127
  %v17 = vadd.s32 %v16, 128
  %v18 = vadd.s32 %v16, 256
  %v19 = vadd.s32 %v16, 384
  %v20 = vadd.s32 %v16, 512
  %v21 = vadd.s32 %v16, 640
  %v22 = vadd.s32 %v16, 768
  %v23 = vadd.s32 %v16, 896
  %v24 = vadd.s32 %v16, 1024
  %v25 = vadd.s32 %v16, 1152
  %v26 = vadd.s32 %v16, 1280
  %v27 = vadd.s32 %v16, 1408
  %v28 = vadd.s32 %v16, 1536
  %v29 = vadd.s32 %v16, 1664
  %v30 = vadd.s32 %v16, 1792
  %v31 = vadd.s32 %v16, 1920
  %v32 = vadd.s32 %v16, 2048
  %v33 = vadd.s32 %v16, 2176
  %v34 = vadd.s32 %v16, 2304
  %v35 = vadd.s32 %v16, 2432
  %v36 = vadd.s32 %v16, 2560
  %v37 = vadd.s32 %v16, 2688
  %v38 = vadd.s32 %v16, 2816
  %v39 = vadd.s32 %v16, 2944
  %v40 = vadd.s32 %v16, 3072
  %v41 = vadd.s32 %v16, 3200
  %v42 = vadd.s32 %v16, 3328
  %v43 = vadd.s32 %v16, 3456
  %v44 = vadd.s32 %v16, 3584
  %v45 = vadd.s32 %v16, 3712
  %v46 = vadd.s32 %v16, 3840
  %v47 = vadd.s32 %v16, 3968
  %v48 = vshll.u32 %v14, 12
  %v49 = vadd.s32 %v48, %v16
  %v50 = vadd.s32 %v48, %v17
  %v51 = vadd.s32 %v48, %v18
  %v52 = vadd.s32 %v48, %v19
  %v53 = vadd.s32 %v48, %v20
  %v54 = vadd.s32 %v48, %v21
  %v55 = vadd.s32 %v48, %v22
  %v56 = vadd.s32 %v48, %v23
  %v57 = vadd.s32 %v48, %v24
  %v58 = vadd.s32 %v48, %v25
  %v59 = vadd.s32 %v48, %v26
  %v60 = vadd.s32 %v48, %v27
  %v61 = vadd.s32 %v48, %v28
  %v62 = vadd.s32 %v48, %v29
  %v63 = vadd.s32 %v48, %v30
  %v64 = vadd.s32 %v48, %v31
  %v65 = vadd.s32 %v48, %v32
  %v66 = vadd.s32 %v48, %v33
  %v67 = vadd.s32 %v48, %v34
  %v68 = vadd.s32 %v48, %v35
  %v69 = vadd.s32 %v48, %v36
  %v70 = vadd.s32 %v48, %v37
  %v71 = vadd.s32 %v48, %v38
  %v72 = vadd.s32 %v48, %v39
  %v73 = vadd.s32 %v48, %v40
  %v74 = vadd.s32 %v48, %v41
  %v75 = vadd.s32 %v48, %v42
  %v76 = vadd.s32 %v48, %v43
  %v77 = vadd.s32 %v48, %v44
  %v78 = vadd.s32 %v48, %v45
  %v79 = vadd.s32 %v48, %v46
  %v80 = vadd.s32 %v48, %v47
  %v81 = vstv %s12
  %v82 = vadd.s32 %v49, %v81
  %v83 = vadd.s32 %v50, %v81
  %v84 = vadd.s32 %v51, %v81
  %v85 = vadd.s32 %v52, %v81
  %v86 = vadd.s32 %v53, %v81
  %v87 = vadd.s32 %v54, %v81
  %v88 = vadd.s32 %v55, %v81
  %v89 = vadd.s32 %v56, %v81
  %v90 = vadd.s32 %v57, %v81
  %v91 = vadd.s32 %v58, %v81
  %v92 = vadd.s32 %v59, %v81
  %v93 = vadd.s32 %v60, %v81
  %v94 = vadd.s32 %v61, %v81
  %v95 = vadd.s32 %v62, %v81
  %v96 = vadd.s32 %v63, %v81
  %v97 = vadd.s32 %v64, %v81
  %v98 = vadd.s32 %v65, %v81
  %v99 = vadd.s32 %v66, %v81
  %v100 = vadd.s32 %v67, %v81
  %v101 = vadd.s32 %v68, %v81
  %v102 = vadd.s32 %v69, %v81
  %v103 = vadd.s32 %v70, %v81
  %v104 = vadd.s32 %v71, %v81
  %v105 = vadd.s32 %v72, %v81
  %v106 = vadd.s32 %v73, %v81
  %v107 = vadd.s32 %v74, %v81
  %v108 = vadd.s32 %v75, %v81
  %v109 = vadd.s32 %v76, %v81
  %v110 = vadd.s32 %v77, %v81
  %v111 = vadd.s32 %v78, %v81
  %v112 = vadd.s32 %v79, %v81
  %v113 = vadd.s32 %v80, %v81
  %v114 = vshrl.u32 %v82, 1
  %v115 = vshrl.u32 %v83, 1
  %v116 = vshrl.u32 %v84, 1
  %v117 = vshrl.u32 %v85, 1
  %v118 = vshrl.u32 %v86, 1
  %v119 = vshrl.u32 %v87, 1
  %v120 = vshrl.u32 %v88, 1
  %v121 = vshrl.u32 %v89, 1
  %v122 = vshrl.u32 %v90, 1
  %v123 = vshrl.u32 %v91, 1
  %v124 = vshrl.u32 %v92, 1
  %v125 = vshrl.u32 %v93, 1
  %v126 = vshrl.u32 %v94, 1
  %v127 = vshrl.u32 %v95, 1
  %v128 = vshrl.u32 %v96, 1
  %v129 = vshrl.u32 %v97, 1
  %v130 = vshrl.u32 %v98, 1
  %v131 = vshrl.u32 %v99, 1
  %v132 = vshrl.u32 %v100, 1
  %v133 = vshrl.u32 %v101, 1
  %v134 = vshrl.u32 %v102, 1
  %v135 = vshrl.u32 %v103, 1
  %v136 = vshrl.u32 %v104, 1
  %v137 = vshrl.u32 %v105, 1
  %v138 = vshrl.u32 %v106, 1
  %v139 = vshrl.u32 %v107, 1
  %v140 = vshrl.u32 %v108, 1
  %v141 = vshrl.u32 %v109, 1
  %v142 = vshrl.u32 %v110, 1
  %v143 = vshrl.u32 %v111, 1
  %v144 = vshrl.u32 %v112, 1
  %v145 = vshrl.u32 %v113, 1
  %v146 = vstv %s11
  %v147 = vxor.u32 %v114, %v146
  %v148 = vxor.u32 %v115, %v146
  %v149 = vxor.u32 %v116, %v146
  %v150 = vxor.u32 %v117, %v146
  %v151 = vxor.u32 %v118, %v146
  %v152 = vxor.u32 %v119, %v146
  %v153 = vxor.u32 %v120, %v146
  %v154 = vxor.u32 %v121, %v146
  %v155 = vxor.u32 %v122, %v146
  %v156 = vxor.u32 %v123, %v146
  %v157 = vxor.u32 %v124, %v146
  %v158 = vxor.u32 %v125, %v146
  %v159 = vxor.u32 %v126, %v146
  %v160 = vxor.u32 %v127, %v146
  %v161 = vxor.u32 %v128, %v146
  %v162 = vxor.u32 %v129, %v146
  %v163 = vxor.u32 %v130, %v146
  %v164 = vxor.u32 %v131, %v146
  %v165 = vxor.u32 %v132, %v146
  %v166 = vxor.u32 %v133, %v146
  %v167 = vxor.u32 %v134, %v146
  %v168 = vxor.u32 %v135, %v146
  %v169 = vxor.u32 %v136, %v146
  %v170 = vxor.u32 %v137, %v146
  %v171 = vxor.u32 %v138, %v146
  %v172 = vxor.u32 %v139, %v146
  %v173 = vxor.u32 %v140, %v146
  %v174 = vxor.u32 %v141, %v146
  %v175 = vxor.u32 %v142, %v146
  %v176 = vxor.u32 %v143, %v146
  %v177 = vxor.u32 %v144, %v146
  %v178 = vxor.u32 %v145, %v146
  %v179 = vshrl.u32 %v147, 16
  %v180 = vshrl.u32 %v148, 16
  %v181 = vshrl.u32 %v149, 16
  %v182 = vshrl.u32 %v150, 16
  %v183 = vshrl.u32 %v151, 16
  %v184 = vshrl.u32 %v152, 16
  %v185 = vshrl.u32 %v153, 16
  %v186 = vshrl.u32 %v154, 16
  %v187 = vshrl.u32 %v155, 16
  %v188 = vshrl.u32 %v156, 16
  %v189 = vshrl.u32 %v157, 16
  %v190 = vshrl.u32 %v158, 16
  %v191 = vshrl.u32 %v159, 16
  %v192 = vshrl.u32 %v160, 16
  %v193 = vshrl.u32 %v161, 16
  %v194 = vshrl.u32 %v162, 16
  %v195 = vshrl.u32 %v163, 16
  %v196 = vshrl.u32 %v164, 16
  %v197 = vshrl.u32 %v165, 16
  %v198 = vshrl.u32 %v166, 16
  %v199 = vshrl.u32 %v167, 16
  %v200 = vshrl.u32 %v168, 16
  %v201 = vshrl.u32 %v169, 16
  %v202 = vshrl.u32 %v170, 16
  %v203 = vshrl.u32 %v171, 16
  %v204 = vshrl.u32 %v172, 16
  %v205 = vshrl.u32 %v173, 16
  %v206 = vshrl.u32 %v174, 16
  %v207 = vshrl.u32 %v175, 16
  %v208 = vshrl.u32 %v176, 16
  %v209 = vshrl.u32 %v177, 16
  %v210 = vshrl.u32 %v178, 16
  %v211 = vxor.u32 %v147, %v179
  %v212 = vxor.u32 %v148, %v180
  %v213 = vxor.u32 %v149, %v181
  %v214 = vxor.u32 %v150, %v182
  %v215 = vxor.u32 %v151, %v183
  %v216 = vxor.u32 %v152, %v184
  %v217 = vxor.u32 %v153, %v185
  %v218 = vxor.u32 %v154, %v186
  %v219 = vxor.u32 %v155, %v187
  %v220 = vxor.u32 %v156, %v188
  %v221 = vxor.u32 %v157, %v189
  %v222 = vxor.u32 %v158, %v190
  %v223 = vxor.u32 %v159, %v191
  %v224 = vxor.u32 %v160, %v192
  %v225 = vxor.u32 %v161, %v193
  %v226 = vxor.u32 %v162, %v194
  %v227 = vxor.u32 %v163, %v195
  %v228 = vxor.u32 %v164, %v196
  %v229 = vxor.u32 %v165, %v197
  %v230 = vxor.u32 %v166, %v198
  %v231 = vxor.u32 %v167, %v199
  %v232 = vxor.u32 %v168, %v200
  %v233 = vxor.u32 %v169, %v201
  %v234 = vxor.u32 %v170, %v202
  %v235 = vxor.u32 %v171, %v203
  %v236 = vxor.u32 %v172, %v204
  %v237 = vxor.u32 %v173, %v205
  %v238 = vxor.u32 %v174, %v206
  %v239 = vxor.u32 %v175, %v207
  %v240 = vxor.u32 %v176, %v208
  %v241 = vxor.u32 %v177, %v209
  %v242 = vxor.u32 %v178, %v210
  %v243 = vmul.u32 %v211, 2146121005
  %v244 = vmul.u32 %v212, 2146121005
  %v245 = vmul.u32 %v213, 2146121005
  %v246 = vmul.u32 %v214, 2146121005
  %v247 = vmul.u32 %v215, 2146121005
  %v248 = vmul.u32 %v216, 2146121005
  %v249 = vmul.u32 %v217, 2146121005
  %v250 = vmul.u32 %v218, 2146121005
  %v251 = vmul.u32 %v219, 2146121005
  %v252 = vmul.u32 %v220, 2146121005
  %v253 = vmul.u32 %v221, 2146121005
  %v254 = vmul.u32 %v222, 2146121005
  %v255 = vmul.u32 %v223, 2146121005
  %v256 = vmul.u32 %v224, 2146121005
  %v257 = vmul.u32 %v225, 2146121005
  %v258 = vmul.u32 %v226, 2146121005
  %v259 = vmul.u32 %v227, 2146121005
  %v260 = vmul.u32 %v228, 2146121005
  %v261 = vmul.u32 %v229, 2146121005
  %v262 = vmul.u32 %v230, 2146121005
  %v263 = vmul.u32 %v231, 2146121005
  %v264 = vmul.u32 %v232, 2146121005
  %v265 = vmul.u32 %v233, 2146121005
  %v266 = vmul.u32 %v234, 2146121005
  %v267 = vmul.u32 %v235, 2146121005
  %v268 = vmul.u32 %v236, 2146121005
  %v269 = vmul.u32 %v237, 2146121005
  %v270 = vmul.u32 %v238, 2146121005
  %v271 = vmul.u32 %v239, 2146121005
  %v272 = vmul.u32 %v240, 2146121005
  %v273 = vmul.u32 %v241, 2146121005
  %v274 = vmul.u32 %v242, 2146121005
  %v275 = vshrl.u32 %v243, 15
  %v276 = vshrl.u32 %v244, 15
  %v277 = vshrl.u32 %v245, 15
  %v278 = vshrl.u32 %v246, 15
  %v279 = vshrl.u32 %v247, 15
  %v280 = vshrl.u32 %v248, 15
  %v281 = vshrl.u32 %v249, 15
  %v282 = vshrl.u32 %v250, 15
  %v283 = vshrl.u32 %v251, 15
  %v284 = vshrl.u32 %v252, 15
  %v285 = vshrl.u32 %v253, 15
  %v286 = vshrl.u32 %v254, 15
  %v287 = vshrl.u32 %v255, 15
  %v288 = vshrl.u32 %v256, 15
  %v289 = vshrl.u32 %v257, 15
  %v290 = vshrl.u32 %v258, 15
  %v291 = vshrl.u32 %v259, 15
  %v292 = vshrl.u32 %v260, 15
  %v293 = vshrl.u32 %v261, 15
  %v294 = vshrl.u32 %v262, 15
  %v295 = vshrl.u32 %v263, 15
  %v296 = vshrl.u32 %v264, 15
  %v297 = vshrl.u32 %v265, 15
  %v298 = vshrl.u32 %v266, 15
  %v299 = vshrl.u32 %v267, 15
  %v300 = vshrl.u32 %v268, 15
  %v301 = vshrl.u32 %v269, 15
  %v302 = vshrl.u32 %v270, 15
  %v303 = vshrl.u32 %v271, 15
  %v304 = vshrl.u32 %v272, 15
  %v305 = vshrl.u32 %v273, 15
  %v306 = vshrl.u32 %v274, 15
  %v307 = vxor.u32 %v243, %v275
  %v308 = vxor.u32 %v244, %v276
  %v309 = vxor.u32 %v245, %v277
  %v310 = vxor.u32 %v246, %v278
  %v311 = vxor.u32 %v247, %v279
  %v312 = vxor.u32 %v248, %v280
  %v313 = vxor.u32 %v249, %v281
  %v314 = vxor.u32 %v250, %v282
  %v315 = vxor.u32 %v251, %v283
  %v316 = vxor.u32 %v252, %v284
  %v317 = vxor.u32 %v253, %v285
  %v318 = vxor.u32 %v254, %v286
  %v319 = vxor.u32 %v255, %v287
  %v320 = vxor.u32 %v256, %v288
  %v321 = vxor.u32 %v257, %v289
  %v322 = vxor.u32 %v258, %v290
  %v323 = vxor.u32 %v259, %v291
  %v324 = vxor.u32 %v260, %v292
  %v325 = vxor.u32 %v261, %v293
  %v326 = vxor.u32 %v262, %v294
  %v327 = vxor.u32 %v263, %v295
  %v328 = vxor.u32 %v264, %v296
  %v329 = vxor.u32 %v265, %v297
  %v330 = vxor.u32 %v266, %v298
  %v331 = vxor.u32 %v267, %v299
  %v332 = vxor.u32 %v268, %v300
  %v333 = vxor.u32 %v269, %v301
  %v334 = vxor.u32 %v270, %v302
  %v335 = vxor.u32 %v271, %v303
  %v336 = vxor.u32 %v272, %v304
  %v337 = vxor.u32 %v273, %v305
  %v338 = vxor.u32 %v274, %v306
  %v339 = vmul.u32 %v307, 2221713035
  %v340 = vmul.u32 %v308, 2221713035
  %v341 = vmul.u32 %v309, 2221713035
  %v342 = vmul.u32 %v310, 2221713035
  %v343 = vmul.u32 %v311, 2221713035
  %v344 = vmul.u32 %v312, 2221713035
  %v345 = vmul.u32 %v313, 2221713035
  %v346 = vmul.u32 %v314, 2221713035
  %v347 = vmul.u32 %v315, 2221713035
  %v348 = vmul.u32 %v316, 2221713035
  %v349 = vmul.u32 %v317, 2221713035
  %v350 = vmul.u32 %v318, 2221713035
  %v351 = vmul.u32 %v319, 2221713035
  %v352 = vmul.u32 %v320, 2221713035
  %v353 = vmul.u32 %v321, 2221713035
  %v354 = vmul.u32 %v322, 2221713035
  %v355 = vmul.u32 %v323, 2221713035
  %v356 = vmul.u32 %v324, 2221713035
  %v357 = vmul.u32 %v325, 2221713035
  %v358 = vmul.u32 %v326, 2221713035
  %v359 = vmul.u32 %v327, 2221713035
  %v360 = vmul.u32 %v328, 2221713035
  %v361 = vmul.u32 %v329, 2221713035
  %v362 = vmul.u32 %v330, 2221713035
  %v363 = vmul.u32 %v331, 2221713035
  %v364 = vmul.u32 %v332, 2221713035
  %v365 = vmul.u32 %v333, 2221713035
  %v366 = vmul.u32 %v334, 2221713035
  %v367 = vmul.u32 %v335, 2221713035
  %v368 = vmul.u32 %v336, 2221713035
  %v369 = vmul.u32 %v337, 2221713035
  %v370 = vmul.u32 %v338, 2221713035
  %vm371 = vcmp.ge.u32.totalorder %v339, 1288490189
  %vm372 = vcmp.ge.u32.totalorder %v340, 1288490189
  %vm373 = vcmp.ge.u32.totalorder %v341, 1288490189
  %vm374 = vcmp.ge.u32.totalorder %v342, 1288490189
  %vm375 = vcmp.ge.u32.totalorder %v343, 1288490189
  %vm376 = vcmp.ge.u32.totalorder %v344, 1288490189
  %vm377 = vcmp.ge.u32.totalorder %v345, 1288490189
  %vm378 = vcmp.ge.u32.totalorder %v346, 1288490189
  %vm379 = vcmp.ge.u32.totalorder %v347, 1288490189
  %vm380 = vcmp.ge.u32.totalorder %v348, 1288490189
  %vm381 = vcmp.ge.u32.totalorder %v349, 1288490189
  %vm382 = vcmp.ge.u32.totalorder %v350, 1288490189
  %vm383 = vcmp.ge.u32.totalorder %v351, 1288490189
  %vm384 = vcmp.ge.u32.totalorder %v352, 1288490189
  %vm385 = vcmp.ge.u32.totalorder %v353, 1288490189
  %vm386 = vcmp.ge.u32.totalorder %v354, 1288490189
  %vm387 = vcmp.ge.u32.totalorder %v355, 1288490189
  %vm388 = vcmp.ge.u32.totalorder %v356, 1288490189
  %vm389 = vcmp.ge.u32.totalorder %v357, 1288490189
  %vm390 = vcmp.ge.u32.totalorder %v358, 1288490189
  %vm391 = vcmp.ge.u32.totalorder %v359, 1288490189
  %vm392 = vcmp.ge.u32.totalorder %v360, 1288490189
  %vm393 = vcmp.ge.u32.totalorder %v361, 1288490189
  %vm394 = vcmp.ge.u32.totalorder %v362, 1288490189
  %vm395 = vcmp.ge.u32.totalorder %v363, 1288490189
  %vm396 = vcmp.ge.u32.totalorder %v364, 1288490189
  %vm397 = vcmp.ge.u32.totalorder %v365, 1288490189
  %vm398 = vcmp.ge.u32.totalorder %v366, 1288490189
  %vm399 = vcmp.ge.u32.totalorder %v367, 1288490189
  %vm400 = vcmp.ge.u32.totalorder %v368, 1288490189
  %vm401 = vcmp.ge.u32.totalorder %v369, 1288490189
  %vm402 = vcmp.ge.u32.totalorder %v370, 1288490189
  %v403 = vsel %vm371, 1.4285715, 0.0
  %v404 = vsel %vm372, 1.4285715, 0.0
  %v405 = vsel %vm373, 1.4285715, 0.0
  %v406 = vsel %vm374, 1.4285715, 0.0
  %v407 = vsel %vm375, 1.4285715, 0.0
  %v408 = vsel %vm376, 1.4285715, 0.0
  %v409 = vsel %vm377, 1.4285715, 0.0
  %v410 = vsel %vm378, 1.4285715, 0.0
  %v411 = vsel %vm379, 1.4285715, 0.0
  %v412 = vsel %vm380, 1.4285715, 0.0
  %v413 = vsel %vm381, 1.4285715, 0.0
  %v414 = vsel %vm382, 1.4285715, 0.0
  %v415 = vsel %vm383, 1.4285715, 0.0
  %v416 = vsel %vm384, 1.4285715, 0.0
  %v417 = vsel %vm385, 1.4285715, 0.0
  %v418 = vsel %vm386, 1.4285715, 0.0
  %v419 = vsel %vm387, 1.4285715, 0.0
  %v420 = vsel %vm388, 1.4285715, 0.0
  %v421 = vsel %vm389, 1.4285715, 0.0
  %v422 = vsel %vm390, 1.4285715, 0.0
  %v423 = vsel %vm391, 1.4285715, 0.0
  %v424 = vsel %vm392, 1.4285715, 0.0
  %v425 = vsel %vm393, 1.4285715, 0.0
  %v426 = vsel %vm394, 1.4285715, 0.0
  %v427 = vsel %vm395, 1.4285715, 0.0
  %v428 = vsel %vm396, 1.4285715, 0.0
  %v429 = vsel %vm397, 1.4285715, 0.0
  %v430 = vsel %vm398, 1.4285715, 0.0
  %v431 = vsel %vm399, 1.4285715, 0.0
  %v432 = vsel %vm400, 1.4285715, 0.0
  %v433 = vsel %vm401, 1.4285715, 0.0
  %v434 = vsel %vm402, 1.4285715, 0.0
  %v435 = vld [vmem:[%s1] sm:$0xff]
  %v436 = vld [vmem:[%s1 + $0x8] sm:$0xff]
  %v437 = vld [vmem:[%s1 + $0x10] sm:$0xff]
  %v438 = vld [vmem:[%s1 + $0x18] sm:$0xff]
  %v471 = vcombine.low %v403, %v404
  %v472 = vcombine.low %v405, %v406
  %v473 = vcombine.low %v407, %v408
  %v474 = vcombine.low %v409, %v410
  %v476 = vunpack.c.l.s4 1966171168
  %v477 = vunpack.c.0.s8 %v476
  %v478 = vlaneseq
  %v479 = vshrl.u32 %v478, 7
  %v480 = vsub.s32 %v477, %v479
  %v481 = vrot.slane %v471, %v480
  %v483 = vunpack.c.l.s4 1966171168
  %v484 = vunpack.c.0.s8 %v483
  %v485 = vlaneseq
  %v486 = vshrl.u32 %v485, 7
  %v487 = vsub.s32 %v484, %v486
  %v488 = vrot.slane %v472, %v487
  %v490 = vunpack.c.l.s4 1966171168
  %v491 = vunpack.c.0.s8 %v490
  %v492 = vlaneseq
  %v493 = vshrl.u32 %v492, 7
  %v494 = vsub.s32 %v491, %v493
  %v495 = vrot.slane %v473, %v494
  %v497 = vunpack.c.l.s4 1966171168
  %v498 = vunpack.c.0.s8 %v497
  %v499 = vlaneseq
  %v500 = vshrl.u32 %v499, 7
  %v501 = vsub.s32 %v498, %v500
  %v502 = vrot.slane %v474, %v501
  %v503 = vcombine.low %v481, %v488
  %v504 = vcombine.low %v495, %v502
  %v506 = vunpack.c.l.s4 1966171168
  %v507 = vunpack.c.0.s8 %v506
  %v508 = vlaneseq
  %v509 = vshrl.u32 %v508, 7
  %v510 = vsub.s32 %v507, %v509
  %v511 = vrot.slane %v503, %v510
  %v513 = vunpack.c.l.s4 1966171168
  %v514 = vunpack.c.0.s8 %v513
  %v515 = vlaneseq
  %v516 = vshrl.u32 %v515, 7
  %v517 = vsub.s32 %v514, %v516
  %v518 = vrot.slane %v504, %v517
  %v519 = vcombine.low %v511, %v518
  %v520 = vcombine.low %v411, %v412
  %v521 = vcombine.low %v413, %v414
  %v522 = vcombine.low %v415, %v416
  %v523 = vcombine.low %v417, %v418
  %v525 = vunpack.c.l.s4 1966171168
  %v526 = vunpack.c.0.s8 %v525
  %v527 = vlaneseq
  %v528 = vshrl.u32 %v527, 7
  %v529 = vsub.s32 %v526, %v528
  %v530 = vrot.slane %v520, %v529
  %v532 = vunpack.c.l.s4 1966171168
  %v533 = vunpack.c.0.s8 %v532
  %v534 = vlaneseq
  %v535 = vshrl.u32 %v534, 7
  %v536 = vsub.s32 %v533, %v535
  %v537 = vrot.slane %v521, %v536
  %v539 = vunpack.c.l.s4 1966171168
  %v540 = vunpack.c.0.s8 %v539
  %v541 = vlaneseq
  %v542 = vshrl.u32 %v541, 7
  %v543 = vsub.s32 %v540, %v542
  %v544 = vrot.slane %v522, %v543
  %v546 = vunpack.c.l.s4 1966171168
  %v547 = vunpack.c.0.s8 %v546
  %v548 = vlaneseq
  %v549 = vshrl.u32 %v548, 7
  %v550 = vsub.s32 %v547, %v549
  %v551 = vrot.slane %v523, %v550
  %v552 = vcombine.low %v530, %v537
  %v553 = vcombine.low %v544, %v551
  %v555 = vunpack.c.l.s4 1966171168
  %v556 = vunpack.c.0.s8 %v555
  %v557 = vlaneseq
  %v558 = vshrl.u32 %v557, 7
  %v559 = vsub.s32 %v556, %v558
  %v560 = vrot.slane %v552, %v559
  %v562 = vunpack.c.l.s4 1966171168
  %v563 = vunpack.c.0.s8 %v562
  %v564 = vlaneseq
  %v565 = vshrl.u32 %v564, 7
  %v566 = vsub.s32 %v563, %v565
  %v567 = vrot.slane %v553, %v566
  %v568 = vcombine.low %v560, %v567
  %v569 = vcombine.low %v419, %v420
  %v570 = vcombine.low %v421, %v422
  %v571 = vcombine.low %v423, %v424
  %v572 = vcombine.low %v425, %v426
  %v574 = vunpack.c.l.s4 1966171168
  %v575 = vunpack.c.0.s8 %v574
  %v576 = vlaneseq
  %v577 = vshrl.u32 %v576, 7
  %v578 = vsub.s32 %v575, %v577
  %v579 = vrot.slane %v569, %v578
  %v581 = vunpack.c.l.s4 1966171168
  %v582 = vunpack.c.0.s8 %v581
  %v583 = vlaneseq
  %v584 = vshrl.u32 %v583, 7
  %v585 = vsub.s32 %v582, %v584
  %v586 = vrot.slane %v570, %v585
  %v588 = vunpack.c.l.s4 1966171168
  %v589 = vunpack.c.0.s8 %v588
  %v590 = vlaneseq
  %v591 = vshrl.u32 %v590, 7
  %v592 = vsub.s32 %v589, %v591
  %v593 = vrot.slane %v571, %v592
  %v595 = vunpack.c.l.s4 1966171168
  %v596 = vunpack.c.0.s8 %v595
  %v597 = vlaneseq
  %v598 = vshrl.u32 %v597, 7
  %v599 = vsub.s32 %v596, %v598
  %v600 = vrot.slane %v572, %v599
  %v601 = vcombine.low %v579, %v586
  %v602 = vcombine.low %v593, %v600
  %v604 = vunpack.c.l.s4 1966171168
  %v605 = vunpack.c.0.s8 %v604
  %v606 = vlaneseq
  %v607 = vshrl.u32 %v606, 7
  %v608 = vsub.s32 %v605, %v607
  %v609 = vrot.slane %v601, %v608
  %v611 = vunpack.c.l.s4 1966171168
  %v612 = vunpack.c.0.s8 %v611
  %v613 = vlaneseq
  %v614 = vshrl.u32 %v613, 7
  %v615 = vsub.s32 %v612, %v614
  %v616 = vrot.slane %v602, %v615
  %v617 = vcombine.low %v609, %v616
  %v618 = vcombine.low %v427, %v428
  %v619 = vcombine.low %v429, %v430
  %v620 = vcombine.low %v431, %v432
  %v621 = vcombine.low %v433, %v434
  %v623 = vunpack.c.l.s4 1966171168
  %v624 = vunpack.c.0.s8 %v623
  %v625 = vlaneseq
  %v626 = vshrl.u32 %v625, 7
  %v627 = vsub.s32 %v624, %v626
  %v628 = vrot.slane %v618, %v627
  %v630 = vunpack.c.l.s4 1966171168
  %v631 = vunpack.c.0.s8 %v630
  %v632 = vlaneseq
  %v633 = vshrl.u32 %v632, 7
  %v634 = vsub.s32 %v631, %v633
  %v635 = vrot.slane %v619, %v634
  %v637 = vunpack.c.l.s4 1966171168
  %v638 = vunpack.c.0.s8 %v637
  %v639 = vlaneseq
  %v640 = vshrl.u32 %v639, 7
  %v641 = vsub.s32 %v638, %v640
  %v642 = vrot.slane %v620, %v641
  %v644 = vunpack.c.l.s4 1966171168
  %v645 = vunpack.c.0.s8 %v644
  %v646 = vlaneseq
  %v647 = vshrl.u32 %v646, 7
  %v648 = vsub.s32 %v645, %v647
  %v649 = vrot.slane %v621, %v648
  %v650 = vcombine.low %v628, %v635
  %v651 = vcombine.low %v642, %v649
  %v653 = vunpack.c.l.s4 1966171168
  %v654 = vunpack.c.0.s8 %v653
  %v655 = vlaneseq
  %v656 = vshrl.u32 %v655, 7
  %v657 = vsub.s32 %v654, %v656
  %v658 = vrot.slane %v650, %v657
  %v660 = vunpack.c.l.s4 1966171168
  %v661 = vunpack.c.0.s8 %v660
  %v662 = vlaneseq
  %v663 = vshrl.u32 %v662, 7
  %v664 = vsub.s32 %v661, %v663
  %v665 = vrot.slane %v651, %v664
  %v666 = vcombine.low %v658, %v665
  %v671 = vmul.f32 %v435, %v519
  %v672 = vmul.f32 %v436, %v568
  %v673 = vmul.f32 %v437, %v617
  %v674 = vmul.f32 %v438, %v666
  %675 = vst [vmem:[%s2] sm:$0xff] %v671
  %676 = vst [vmem:[%s2 + $0x8] sm:$0xff] %v672
  %677 = vst [vmem:[%s2 + $0x10] sm:$0xff] %v673
  %678 = vst [vmem:[%s2 + $0x18] sm:$0xff] %v674
  // Predicated region
  $region6: #{complex_dropout.1} parent=0 // pred_check
    _
  $region7: #{complex_dropout.1} parent=0 // pred_check_branch
    %680 = sbr.rel (0) target = $region9
  $region8: #{complex_dropout.1} parent=0 // pred_region
    _
  $region9: #{complex_dropout.1} parent=0 // pred_fallthru
    _
  // Predicated region
  $region10: #{complex_dropout.1} parent=0 // pred_check
    _
  $region11: #{complex_dropout.1} parent=0 // pred_check_branch
    %682 = sbr.rel (0) target = $region13
  $region12: #{complex_dropout.1} parent=0 // pred_region
    _
  $region13: #{complex_dropout.1} parent=0 // pred_fallthru
    _

// kernel: custom-call.2
$region0: #{custom-call.2}
  %s0 = inlined_call_operand.vmem [shape: f32[2,4,16,16], index: 0, kind: input, shape index: {}]
  %s1 = inlined_call_operand.vmem [shape: f32[2,4,16,16], index: 1, kind: input, shape index: {}]
  %s2 = inlined_call_operand.hbm [shape: c64[2,4,16,16], index: 2, kind: output, shape index: {}]
  %s3 = scalar_lea.hbm %s2, 2048
  $region1: #{custom-call.2} parent=0
    #allocation0 [shape = 's32[1]{0}', space=sflag, size = 0x4, scoped, tag = 'scoped memory for custom-call.2']
    %4 = vsyncpa [#allocation0], 0
    %s5 = sshll.u32 %s0, 4
    %s6 = int_to_ptr.vmem [resolvable:$true] %s5
    %8 = dma.vmem_to_hbm [thread:$0]  %s6, 2048, %s2, [#allocation0]
    %9 = dma.done [#allocation0], 2048
    %10 = vsyncpa [#allocation0], 1
  $region2: #{custom-call.2} parent=0
    #allocation1 [shape = 's32[1]{0}', space=sflag, size = 0x4, scoped, tag = 'scoped memory for custom-call.2']
    %11 = vsyncpa [#allocation1], 0
    %s12 = sshll.u32 %s1, 4
    %s13 = int_to_ptr.vmem [resolvable:$true] %s12
    %15 = dma.vmem_to_hbm [thread:$0]  %s13, 2048, %s3, [#allocation1]
    %16 = dma.done [#allocation1], 2048
    %17 = vsyncpa [#allocation1], 1

</llo_original>
